<compile_context>
chip_gen: v5e
topology: v5e:2x2
jax: 0.10.0
libtpu: 0.0.40
codegen_flags: <defaults>
</compile_context>

<pallas_src>
import functools

import jax
import jax.numpy as jnp
from jax.experimental import pallas as pl
from jax.experimental.pallas import tpu as pltpu

_LANE = 128
_SUBLANE = 8
_NEG_INF = -1e30


def _round_up(n, m):
    return ((n + m - 1) // m) * m


def _pad2d(a, rows, cols, fill=0.0):
    return jnp.pad(a, ((0, rows - a.shape[0]), (0, cols - a.shape[1])),
                   constant_values=fill)


def gating_kernel(x_ref, w1_ref, b1_ref, w2_ref, b2_ref, o_ref):
    # fc1: x @ W1 + b1, ReLU.  Padded K rows / H columns are zero -> no effect.
    x = x_ref[...]
    h = jnp.dot(x, w1_ref[...], preferred_element_type=jnp.float32) + b1_ref[...]
    h = jnp.maximum(h, 0.0)
    # fc2: h @ W2 + b2.  Padded expert columns carry bias -1e30 -> exp() == 0.
    logits = jnp.dot(h, w2_ref[...], preferred_element_type=jnp.float32) + b2_ref[...]
    # Softmax over experts (last axis), lane-dense (E padded to 128).
    m = jnp.max(logits, axis=-1, keepdims=True)
    e = jnp.exp(logits - m)
    denom = jnp.sum(e, axis=-1, keepdims=True)
    # Exact reciprocal keeps the divide off the VALU path (EUP) without hurting accuracy.
    o_ref[...] = (e * pl.reciprocal(denom)).astype(o_ref.dtype)


@functools.partial(jax.jit, static_argnames=("block_b",))
def gating_network(x, w1, b1, w2, b2, *, block_b=128):
    """x: [B, D_in], w1: [D_in, H], b1: [1, H], w2: [H, E], b2: [1, E] -> [B, E] f32."""
    B, D_in = x.shape
    H = w1.shape[1]
    E = w2.shape[1]

    # Lane/sublane-aligned padded sizes.
    d_pad = _round_up(D_in, _LANE)
    h_pad = _round_up(H, _LANE)
    e_pad = _round_up(E, _LANE)
    tb = block_b if B >= block_b else _round_up(B, _SUBLANE)
    b_pad = _round_up(B, tb)

    xp = _pad2d(x.astype(jnp.float32), b_pad, d_pad)
    w1p = _pad2d(w1.astype(jnp.float32), d_pad, h_pad)
    b1p = _pad2d(b1.astype(jnp.float32), 1, h_pad)
    w2p = _pad2d(w2.astype(jnp.float32), h_pad, e_pad)
    # Padded expert logits must not receive probability mass: drive them to -1e30.
    b2p = _pad2d(b2.astype(jnp.float32), 1, e_pad, fill=_NEG_INF)

    grid = (b_pad // tb,)
    flops = 2 * b_pad * (d_pad * h_pad + h_pad * e_pad)
    bytes_accessed = 4 * (b_pad * d_pad + d_pad * h_pad + h_pad
                          + h_pad * e_pad + e_pad + b_pad * e_pad)

    # TODO(synk): for production-scale D_in/H, budget weight residency against
    # v7x's 64 MiB VMEM (vmem_limit_bytes + a K-tiling "arbitrary" axis) and feed
    # the MXU bf16 operands; at these toy sizes f32-resident weights are optimal.
    out_p = pl.pallas_call(
        gating_kernel,
        out_shape=jax.ShapeDtypeStruct((b_pad, e_pad), jnp.float32),
        grid=grid,
        in_specs=[
            pl.BlockSpec((tb, d_pad), lambda i: (i, 0)),       # x: batch-tiled
            pl.BlockSpec((d_pad, h_pad), lambda i: (0, 0)),    # w1: VMEM-resident
            pl.BlockSpec((1, h_pad), lambda i: (0, 0)),        # b1: full lane width
            pl.BlockSpec((h_pad, e_pad), lambda i: (0, 0)),    # w2: VMEM-resident
            pl.BlockSpec((1, e_pad), lambda i: (0, 0)),        # b2: full lane width
        ],
        out_specs=pl.BlockSpec((tb, e_pad), lambda i: (i, 0)),
        compiler_params=pltpu.CompilerParams(
            dimension_semantics=("parallel",)),
        cost_estimate=pl.CostEstimate(
            flops=flops,
            transcendentals=b_pad * e_pad,
            bytes_accessed=bytes_accessed),
    )(xp, w1p, b1p, w2p, b2p)

    return out_p[:B, :E]


def init_params(key, input_dim, num_experts, hidden_dim):
    """Deterministic init mimicking torch.nn.Linear default (uniform +-1/sqrt(fan_in))."""
    k1, k2, k3, k4 = jax.random.split(key, 4)
    lim1 = 1.0 / jnp.sqrt(jnp.float32(input_dim))
    lim2 = 1.0 / jnp.sqrt(jnp.float32(hidden_dim))
    w1 = jax.random.uniform(k1, (input_dim, hidden_dim), jnp.float32, -lim1, lim1)
    b1 = jax.random.uniform(k2, (1, hidden_dim), jnp.float32, -lim1, lim1)
    w2 = jax.random.uniform(k3, (hidden_dim, num_experts), jnp.float32, -lim2, lim2)
    b2 = jax.random.uniform(k4, (1, num_experts), jnp.float32, -lim2, lim2)
    return w1, b1, w2, b2


def gating_reference(x, w1, b1, w2, b2):
    h = jnp.maximum(x @ w1 + b1, 0.0)
    logits = h @ w2 + b2
    return jax.nn.softmax(logits, axis=1)


if __name__ == "__main__":
    batch, input_dim, hidden_dim, num_experts = 8, 32, 64, 4

    key = jax.random.PRNGKey(0)
    kx, kp = jax.random.split(key)
    x = jax.random.normal(kx, (batch, input_dim), jnp.float32)
    w1, b1, w2, b2 = init_params(kp, input_dim, num_experts, hidden_dim)

    out = gating_network(x, w1, b1, w2, b2)
    out = jax.block_until_ready(out)

    ref = gating_reference(x, w1, b1, w2, b2)
    assert out.shape == (batch, num_experts)
    assert jnp.allclose(out, ref, atol=1e-5, rtol=1e-5)
    assert jnp.allclose(jnp.sum(out, axis=1), 1.0, atol=1e-5)

    print("KERNEL_OK")
</pallas_src>

<mosaic_0001>
module attributes {stable_mosaic.version = 11 : i64} {
  func.func @gating_kernel(%arg0: i32, %arg1: memref<8x128xf32, #tpu.memory_space<vmem>>, %arg2: memref<128x128xf32, #tpu.memory_space<vmem>>, %arg3: memref<1x128xf32, #tpu.memory_space<vmem>>, %arg4: memref<128x128xf32, #tpu.memory_space<vmem>>, %arg5: memref<1x128xf32, #tpu.memory_space<vmem>>, %arg6: memref<8x128xf32, #tpu.memory_space<vmem>>) attributes {dimension_semantics = [#tpu.dimension_semantics<parallel>], iteration_bounds = array<i64: 1>, scalar_prefetch = 0 : i64, scratch_operands = 0 : i64, tpu.core_type = #tpu.core_type<tc>, window_params = [{transform_indices = @transform_0, window_bounds = array<i64: 8, 128>}, {pipeline_mode = #tpu.pipeline_mode<synchronous>, transform_indices = @transform_1, window_bounds = array<i64: 128, 128>}, {pipeline_mode = #tpu.pipeline_mode<synchronous>, transform_indices = @transform_2, window_bounds = array<i64: 1, 128>}, {pipeline_mode = #tpu.pipeline_mode<synchronous>, transform_indices = @transform_3, window_bounds = array<i64: 128, 128>}, {pipeline_mode = #tpu.pipeline_mode<synchronous>, transform_indices = @transform_4, window_bounds = array<i64: 1, 128>}, {transform_indices = @transform_5, window_bounds = array<i64: 8, 128>}]} {
    %c0 = arith.constant 0 : index
    %c0_0 = arith.constant 0 : index
    %0 = vector.load %arg1[%c0, %c0_0] : memref<8x128xf32, #tpu.memory_space<vmem>>, vector<8x128xf32>
    %c0_1 = arith.constant 0 : index
    %c0_2 = arith.constant 0 : index
    %1 = vector.load %arg2[%c0_1, %c0_2] : memref<128x128xf32, #tpu.memory_space<vmem>>, vector<128x128xf32>
    %cst = arith.constant dense<0.000000e+00> : vector<8x128xf32>
    %2 = tpu.matmul %0, %1, %cst {dimension_numbers = #tpu.dot_dimension_numbers<[1], [0], [0], [1], [0, 0, 1, 1], [], []>} : vector<8x128xf32>, vector<128x128xf32>, vector<8x128xf32> -> vector<8x128xf32>
    %c0_3 = arith.constant 0 : index
    %c0_4 = arith.constant 0 : index
    %3 = vector.load %arg3[%c0_3, %c0_4] : memref<1x128xf32, #tpu.memory_space<vmem>>, vector<1x128xf32>
    %4 = vector.broadcast %3 : vector<1x128xf32> to vector<8x128xf32>
    %5 = arith.addf %2, %4 : vector<8x128xf32>
    %cst_5 = arith.constant 0.000000e+00 : f32
    %6 = vector.broadcast %cst_5 : f32 to vector<8x128xf32>
    %7 = arith.maximumf %5, %6 : vector<8x128xf32>
    %c0_6 = arith.constant 0 : index
    %c0_7 = arith.constant 0 : index
    %8 = vector.load %arg4[%c0_6, %c0_7] : memref<128x128xf32, #tpu.memory_space<vmem>>, vector<128x128xf32>
    %cst_8 = arith.constant dense<0.000000e+00> : vector<8x128xf32>
    %9 = tpu.matmul %7, %8, %cst_8 {dimension_numbers = #tpu.dot_dimension_numbers<[1], [0], [0], [1], [0, 0, 1, 1], [], []>} : vector<8x128xf32>, vector<128x128xf32>, vector<8x128xf32> -> vector<8x128xf32>
    %c0_9 = arith.constant 0 : index
    %c0_10 = arith.constant 0 : index
    %10 = vector.load %arg5[%c0_9, %c0_10] : memref<1x128xf32, #tpu.memory_space<vmem>>, vector<1x128xf32>
    %11 = vector.broadcast %10 : vector<1x128xf32> to vector<8x128xf32>
    %12 = arith.addf %9, %11 : vector<8x128xf32>
    %cst_11 = arith.constant dense<0xFF800000> : vector<8xf32>
    %13 = vector.multi_reduction <maximumf>, %12, %cst_11 [1] : vector<8x128xf32> to vector<8xf32>
    %14 = vector.shape_cast %13 : vector<8xf32> to vector<8x1xf32>
    %15 = vector.broadcast %14 : vector<8x1xf32> to vector<8x128xf32>
    %16 = arith.subf %12, %15 : vector<8x128xf32>
    %17 = math.exp %16 : vector<8x128xf32>
    %cst_12 = arith.constant dense<0.000000e+00> : vector<8xf32>
    %18 = vector.multi_reduction <add>, %17, %cst_12 [1] : vector<8x128xf32> to vector<8xf32>
    %19 = vector.shape_cast %18 : vector<8xf32> to vector<8x1xf32>
    %20 = tpu.reciprocal %19 : vector<8x1xf32> -> vector<8x1xf32>
    %21 = vector.broadcast %20 : vector<8x1xf32> to vector<8x128xf32>
    %22 = arith.mulf %17, %21 : vector<8x128xf32>
    %c0_13 = arith.constant 0 : index
    %c0_14 = arith.constant 0 : index
    %23 = vector.load %arg6[%c0_13, %c0_14] : memref<8x128xf32, #tpu.memory_space<vmem>>, vector<8x128xf32>
    tpu.vector_store %arg6[%c0_13, %c0_14], %22 {strides = array<i32>} : memref<8x128xf32, #tpu.memory_space<vmem>>, vector<8x128xf32>,
    return
  }
  func.func @transform_0(%arg0: i32) -> (i32, i32) {
    %c0_i32 = arith.constant 0 : i32
    %c0_i32_0 = arith.constant 0 : i32
    return %arg0, %c0_i32 : i32, i32
  }
  func.func @transform_1(%arg0: i32) -> (i32, i32) {
    %c0_i32 = arith.constant 0 : i32
    %c0_i32_0 = arith.constant 0 : i32
    %c0_i32_1 = arith.constant 0 : i32
    return %c0_i32, %c0_i32_0 : i32, i32
  }
  func.func @transform_2(%arg0: i32) -> (i32, i32) {
    %c0_i32 = arith.constant 0 : i32
    %c0_i32_0 = arith.constant 0 : i32
    %c0_i32_1 = arith.constant 0 : i32
    return %c0_i32, %c0_i32_0 : i32, i32
  }
  func.func @transform_3(%arg0: i32) -> (i32, i32) {
    %c0_i32 = arith.constant 0 : i32
    %c0_i32_0 = arith.constant 0 : i32
    %c0_i32_1 = arith.constant 0 : i32
    return %c0_i32, %c0_i32_0 : i32, i32
  }
  func.func @transform_4(%arg0: i32) -> (i32, i32) {
    %c0_i32 = arith.constant 0 : i32
    %c0_i32_0 = arith.constant 0 : i32
    %c0_i32_1 = arith.constant 0 : i32
    return %c0_i32, %c0_i32_0 : i32, i32
  }
  func.func @transform_5(%arg0: i32) -> (i32, i32) {
    %c0_i32 = arith.constant 0 : i32
    %c0_i32_0 = arith.constant 0 : i32
    return %arg0, %c0_i32 : i32, i32
  }
}

</mosaic_0001>

<llo_original>
// kernel: gating_network.1
$region0: #{gating_network.1}
  #allocation0 [shape = 'u32[]', space=smem, size = 0x4, offset = 0x4, fixed_abs, tag = 'smem constant byte address 0x4 - core index']
  #allocation1 [shape = 'u32[72,128]{1,0:T(1,128)}', space=vmem, size = 0x9000, scoped, tag = 'internal scratch']
  %s0 = inlined_call_operand.vmem [shape: f32[8,128], index: 0, kind: input, shape index: {}]
  %s1 = inlined_call_operand.vmem [shape: f32[128,128], index: 1, kind: input, shape index: {}]
  %s2 = inlined_call_operand.vmem [shape: f32[1,128], index: 2, kind: input, shape index: {}]
  %s3 = inlined_call_operand.vmem [shape: f32[128,128], index: 3, kind: input, shape index: {}]
  %s4 = inlined_call_operand.vmem [shape: f32[1,128], index: 4, kind: input, shape index: {}]
  %s5 = inlined_call_operand.vmem [shape: f32[8,128], index: 5, kind: output, shape index: {}]
  %s6 = sld [smem:[#allocation0]]
  $region30: #{gating_network.1} parent=0
    _
  %s8 = ssub.s32 1, %s6
  %s9 = scalar_select 0, %s8, %s6
  // Predicated region
  $region2: #{gating_network.1} parent=0 // pred_check
    _
  $region3: #{gating_network.1} parent=0 // pred_check_branch
    %11 = sbr.rel (0) target = $region5
  $region4: #{gating_network.1} parent=0 // pred_region
    _
  $region5: #{gating_network.1} parent=0 // pred_fallthru
    _
  // Predicated region
  $region6: #{gating_network.1} parent=0 // pred_check
    _
  $region7: #{gating_network.1} parent=0 // pred_check_branch
    %13 = sbr.rel (0) target = $region9
  $region8: #{gating_network.1} parent=0 // pred_region
    _
  $region9: #{gating_network.1} parent=0 // pred_fallthru
    _
  // Predicated region
  $region10: #{gating_network.1} parent=0 // pred_check
    _
  $region11: #{gating_network.1} parent=0 // pred_check_branch
    %15 = sbr.rel (0) target = $region13
  $region12: #{gating_network.1} parent=0 // pred_region
    _
  $region13: #{gating_network.1} parent=0 // pred_fallthru
    _
  // Predicated region
  $region14: #{gating_network.1} parent=0 // pred_check
    _
  $region15: #{gating_network.1} parent=0 // pred_check_branch
    %17 = sbr.rel (0) target = $region17
  $region16: #{gating_network.1} parent=0 // pred_region
    _
  $region17: #{gating_network.1} parent=0 // pred_fallthru
    _
  // Predicated region
  $region18: #{gating_network.1} parent=0 // pred_check
    _
  $region19: #{gating_network.1} parent=0 // pred_check_branch
    %19 = sbr.rel (0) target = $region21
  $region20: #{gating_network.1} parent=0 // pred_region
    _
  $region21: #{gating_network.1} parent=0 // pred_fallthru
    _
  %v20 = vld [vmem:[%s0] sm:$0xff]
  %v21 = vld [vmem:[%s1] sm:$0xff]
  %v22 = vld [vmem:[%s1 + $0x8] sm:$0xff]
  %v23 = vld [vmem:[%s1 + $0x10] sm:$0xff]
  %v24 = vld [vmem:[%s1 + $0x18] sm:$0xff]
  %v25 = vld [vmem:[%s1 + $0x20] sm:$0xff]
  %v26 = vld [vmem:[%s1 + $0x28] sm:$0xff]
  %v27 = vld [vmem:[%s1 + $0x30] sm:$0xff]
  %v28 = vld [vmem:[%s1 + $0x38] sm:$0xff]
  %v29 = vld [vmem:[%s1 + $0x40] sm:$0xff]
  %v30 = vld [vmem:[%s1 + $0x48] sm:$0xff]
  %v31 = vld [vmem:[%s1 + $0x50] sm:$0xff]
  %v32 = vld [vmem:[%s1 + $0x58] sm:$0xff]
  %v33 = vld [vmem:[%s1 + $0x60] sm:$0xff]
  %v34 = vld [vmem:[%s1 + $0x68] sm:$0xff]
  %v35 = vld [vmem:[%s1 + $0x70] sm:$0xff]
  %v36 = vld [vmem:[%s1 + $0x78] sm:$0xff]
  %v37 = vld [vmem:[%s2] sm:$0x1]
  %v39 = vperm.slane %v37, 0
  %41 = vmatpush.msra.mxu0 %v36
  %42 = vmatpush.msra.mxu0 %v35
  %43 = vmatpush.msra.mxu0 %v34
  %44 = vmatpush.msra.mxu0 %v33
  %45 = vmatpush.msra.mxu0 %v32
  %46 = vmatpush.msra.mxu0 %v31
  %47 = vmatpush.msra.mxu0 %v30
  %48 = vmatpush.msra.mxu0 %v29
  %49 = vmatpush.msra.mxu0 %v28
  %50 = vmatpush.msra.mxu0 %v27
  %51 = vmatpush.msra.mxu0 %v26
  %52 = vmatpush.msra.mxu0 %v25
  %53 = vmatpush.msra.mxu0 %v24
  %54 = vmatpush.msra.mxu0 %v23
  %55 = vmatpush.msra.mxu0 %v22
  %56 = vmatpush.msra.mxu0 %v21
  %57 = vmatmul.f32.gmra.mxu0 %v20
  %v58 = vpop.f32.mrf.mxu0
  %v59 = vadd.f32 %v39, %v58
  %60 = vdwg.mxu0
  %v61 = vmax.f32 %v59, 0.0
  %v62 = vld [vmem:[%s3] sm:$0xff]
  %v63 = vld [vmem:[%s3 + $0x8] sm:$0xff]
  %v64 = vld [vmem:[%s3 + $0x10] sm:$0xff]
  %v65 = vld [vmem:[%s3 + $0x18] sm:$0xff]
  %v66 = vld [vmem:[%s3 + $0x20] sm:$0xff]
  %v67 = vld [vmem:[%s3 + $0x28] sm:$0xff]
  %v68 = vld [vmem:[%s3 + $0x30] sm:$0xff]
  %v69 = vld [vmem:[%s3 + $0x38] sm:$0xff]
  %v70 = vld [vmem:[%s3 + $0x40] sm:$0xff]
  %v71 = vld [vmem:[%s3 + $0x48] sm:$0xff]
  %v72 = vld [vmem:[%s3 + $0x50] sm:$0xff]
  %v73 = vld [vmem:[%s3 + $0x58] sm:$0xff]
  %v74 = vld [vmem:[%s3 + $0x60] sm:$0xff]
  %v75 = vld [vmem:[%s3 + $0x68] sm:$0xff]
  %v76 = vld [vmem:[%s3 + $0x70] sm:$0xff]
  %v77 = vld [vmem:[%s3 + $0x78] sm:$0xff]
  %v78 = vld [vmem:[%s4] sm:$0x1]
  %v80 = vperm.slane %v78, 0
  %82 = vmatpush.msra.mxu0 %v77
  %83 = vmatpush.msra.mxu0 %v76
  %84 = vmatpush.msra.mxu0 %v75
  %85 = vmatpush.msra.mxu0 %v74
  %86 = vmatpush.msra.mxu0 %v73
  %87 = vmatpush.msra.mxu0 %v72
  %88 = vmatpush.msra.mxu0 %v71
  %89 = vmatpush.msra.mxu0 %v70
  %90 = vmatpush.msra.mxu0 %v69
  %91 = vmatpush.msra.mxu0 %v68
  %92 = vmatpush.msra.mxu0 %v67
  %93 = vmatpush.msra.mxu0 %v66
  %94 = vmatpush.msra.mxu0 %v65
  %95 = vmatpush.msra.mxu0 %v64
  %96 = vmatpush.msra.mxu0 %v63
  %97 = vmatpush.msra.mxu0 %v62
  %98 = vmatmul.f32.gmra.mxu0 %v61
  %v99 = vpop.f32.mrf.mxu0
  %v100 = vadd.f32 %v80, %v99
  %101 = vdwg.mxu0
  %102 = vmax.xlane.f32.xlu0 %v100
  %v103 = vpop.xlane.xlu0 %102
  %v104 = vsub.f32 %v100, %v103
  %v105 = vmul.f32 %v104, 1.442695
  %v106 = vpow.pop %v105
  %107 = vadd.xlane.f32.xlu0 %v106
  %v108 = vpop.xlane.xlu0 %107
  %v109 = vrcp.pop %v108
  %v110 = vmul.f32 %v108, %v109
  %v111 = vsub.f32 1.0, %v110
  %v112 = vmul.f32 %v109, %v111
  %v113 = vadd.f32 %v109, %v112
  %vm114 = vweird.f32 %v108
  %vm115 = vweird.f32 %v109
  %vm116 = vmor %vm114, %vm115
  %v117 = vsel %vm116, %v109, %v113
  %v118 = vand.u32 2147483647, %v108
  %vm119 = vcmp.eq.f32.partialorder %v118, 8.507059e+37
  %v120 = vand.u32 %v108, 2147483648
  %v121 = vor.u32 1.1754944e-38, %v120
  %v122 = vsel %vm119, %v121, %v117
  %v123 = vmul.f32 %v106, %v122
  %124 = vst [vmem:[%s5] sm:$0xff] %v123
  // Predicated region
  $region22: #{gating_network.1} parent=0 // pred_check
    _
  $region23: #{gating_network.1} parent=0 // pred_check_branch
    %126 = sbr.rel (0) target = $region25
  $region24: #{gating_network.1} parent=0 // pred_region
    _
  $region25: #{gating_network.1} parent=0 // pred_fallthru
    _
  // Predicated region
  $region26: #{gating_network.1} parent=0 // pred_check
    _
  $region27: #{gating_network.1} parent=0 // pred_check_branch
    %128 = sbr.rel (0) target = $region29
  $region28: #{gating_network.1} parent=0 // pred_region
    _
  $region29: #{gating_network.1} parent=0 // pred_fallthru
    _

</llo_original>
